<compile_context>
chip_gen: v7x
topology: tpu7x:2x2x1
jax: 0.10.0
libtpu: 0.0.40
codegen_flags: <defaults>
</compile_context>

<pallas_src>
import jax
import jax.numpy as jnp
from jax.experimental import pallas as pl
from jax.experimental.pallas import tpu as pltpu

_LANE = 128
_MAX_LANES = 8192                       # cap the lane-dense last dim
_TARGET_BLOCK_BYTES = 4 * 1024 * 1024   # ~4 MiB per block (x2 bufs x in/out fits VMEM)
_SINGLE_BLOCK_MAX_BYTES = 4 * 1024 * 1024
_MIN_GRID_STEPS = 4                     # keep v7x's 2 TensorCores fed
_VMEM_LIMIT_BYTES = 32 * 1024 * 1024    # > v5e's 16 MiB scoped default, < v7x physical


def _identity_kernel(x_ref, o_ref):
    # Pure pass-through of the current VMEM tile.
    o_ref[...] = x_ref[...]


def _sublane_multiple(dtype):
    # f32 -> 8, bf16 -> 16, int8 -> 32 (sub-32-bit dtypes pack along sublanes).
    itemsize = jnp.dtype(dtype).itemsize
    return max(8, 8 * (4 // max(1, itemsize)))


def _choose_lane_width(total_elems):
    """Largest multiple of 128 that divides total_elems (capped), else None."""
    if total_elems % _LANE != 0:
        return None
    best = _LANE
    lanes = _LANE
    cap = min(_MAX_LANES, total_elems)
    while lanes <= cap:
        if total_elems % lanes == 0:
            best = lanes
        lanes += _LANE
    return best


def _identity_pallas_2d(x2d):
    rows, cols = x2d.shape
    itemsize = jnp.dtype(x2d.dtype).itemsize
    total_bytes = rows * cols * itemsize
    sub = _sublane_multiple(x2d.dtype)

    compiler_params = pltpu.CompilerParams(
        dimension_semantics=("parallel",),
        vmem_limit_bytes=_VMEM_LIMIT_BYTES,
    )

    # Small tensors: one full-array block — a single DMA, zero per-step overhead.
    # (block dims equal to the full array dims are exempt from the (8,128) rule.)
    if total_bytes <= _SINGLE_BLOCK_MAX_BYTES or rows < sub:
        return pl.pallas_call(
            _identity_kernel,
            out_shape=jax.ShapeDtypeStruct((rows, cols), x2d.dtype),
            grid_spec=pltpu.PrefetchScalarGridSpec(
                num_scalar_prefetch=0,
                grid=(1,),
                in_specs=[pl.BlockSpec((rows, cols), lambda i: (0, 0))],
                out_specs=pl.BlockSpec((rows, cols), lambda i: (0, 0)),
            ),
            input_output_aliases={0: 0},
            compiler_params=compiler_params,
        )(x2d)

    # Large tensors: tile rows into ~_TARGET_BLOCK_BYTES blocks (row count a
    # multiple of the packed sublane count; cols stays the full last dim, so
    # every store is lane-dense), keeping >= _MIN_GRID_STEPS grid iterations.
    bytes_per_row = cols * itemsize
    tile_rows = max(sub, (_TARGET_BLOCK_BYTES // max(1, bytes_per_row)) // sub * sub)
    tile_rows = min(tile_rows, (rows // sub) * sub)
    while tile_rows > sub and pl.cdiv(rows, tile_rows) < _MIN_GRID_STEPS:
        tile_rows = max(sub, (tile_rows // 2) // sub * sub)

    grid = (pl.cdiv(rows, tile_rows),)
    return pl.pallas_call(
        _identity_kernel,
        out_shape=jax.ShapeDtypeStruct((rows, cols), x2d.dtype),
        grid_spec=pltpu.PrefetchScalarGridSpec(
            num_scalar_prefetch=0,
            grid=grid,
            in_specs=[pl.BlockSpec((tile_rows, cols), lambda i: (i, 0))],
            out_specs=pl.BlockSpec((tile_rows, cols), lambda i: (i, 0)),
        ),
        input_output_aliases={0: 0},
        compiler_params=compiler_params,
    )(x2d)


@jax.jit
def _identity(x):
    """Identity pass via a lane-dense, row-tiled Pallas copy kernel."""
    shape = x.shape
    total = 1
    for d in shape:
        total *= int(d)
    lanes = _choose_lane_width(total)
    if lanes is None:
        # Element count not a multiple of 128: keep the original last dim as
        # lanes (legal via the full-array-dim exception to the (8,128) rule).
        lead = max(1, total // int(shape[-1]))
        x2d = x.reshape(lead, int(shape[-1]))
    else:
        x2d = x.reshape(total // lanes, lanes)
    y2d = _identity_pallas_2d(x2d)
    return y2d.reshape(shape)


class BaseModel:
    """JAX/Pallas analogue of seq2seq BaseModel (abstract, zero params)."""

    def __init__(self):
        # The PyTorch __init__ registers no parameters.
        self.params = {}

    def forward(self, *inputs):
        # Faithful to the reference: abstract forward.
        raise NotImplementedError

    def __repr__(self):
        total_params = sum(int(p.size) for p in jax.tree_util.tree_leaves(self.params))
        return "\nBaseModel()\nTotal Trainable Params: {}".format(total_params)

    # --- the Pallas-backed path a concrete subclass would override ---------
    def identity_forward(self, x_nchw):
        """Identity pass implemented as a Pallas TPU kernel (NCHW in == out)."""
        return _identity(x_nchw)

    # save()/load() in the PyTorch module are filesystem I/O, not forward
    # compute; no Pallas equivalent.  TODO(synk): parameter checkpointing is
    # intentionally out of scope for a kernel port.


if __name__ == "__main__":
    key = jax.random.PRNGKey(0)
    model = BaseModel()

    # The abstract forward must raise, exactly like the PyTorch module.
    raised = False
    try:
        model.forward(jnp.zeros((1,)))
    except NotImplementedError:
        raised = True
    assert raised, "BaseModel.forward should raise NotImplementedError"

    # Small NCHW input (single-block path).
    x_small = jax.random.normal(key, (2, 4, 16, 16), dtype=jnp.float32)
    y_small = jax.block_until_ready(model.identity_forward(x_small))
    assert y_small.shape == x_small.shape and y_small.dtype == x_small.dtype
    assert bool(jnp.all(y_small == x_small))

    # Larger input (tiled, multi-step grid path: lane-dense (2048, 8192) slab
    # for f32, 128-row / 4 MiB blocks, >= 4 grid steps).
    x_big = jax.random.normal(key, (8, 16, 128, 128), dtype=jnp.float32)
    y_big = jax.block_until_ready(model.identity_forward(x_big))
    assert y_big.shape == x_big.shape and y_big.dtype == x_big.dtype
    assert bool(jnp.all(y_big == x_big))

    # Odd-sized input (element count not a multiple of 128) exercises the
    # full-array-dim fallback path.
    x_odd = jax.random.normal(key, (3, 5, 7), dtype=jnp.float32)
    y_odd = jax.block_until_ready(model.identity_forward(x_odd))
    assert y_odd.shape == x_odd.shape and bool(jnp.all(y_odd == x_odd))

    assert repr(model).endswith("Total Trainable Params: 0")

    print("KERNEL_OK")
</pallas_src>

<mosaic_0001>
module attributes {stable_mosaic.version = 11 : i64} {
  func.func @_identity_kernel(%arg0: i32, %arg1: memref<1x2048xf32, #tpu.memory_space<vmem>>, %arg2: memref<1x2048xf32, #tpu.memory_space<vmem>>) attributes {dimension_semantics = [#tpu.dimension_semantics<parallel>], iteration_bounds = array<i64: 1>, scalar_prefetch = 0 : i64, scratch_operands = 0 : i64, tpu.core_type = #tpu.core_type<tc>, window_params = [{pipeline_mode = #tpu.pipeline_mode<synchronous>, transform_indices = @transform_0, window_bounds = array<i64: 1, 2048>}, {pipeline_mode = #tpu.pipeline_mode<synchronous>, transform_indices = @transform_1, window_bounds = array<i64: 1, 2048>}]} {
    %c0 = arith.constant 0 : index
    %c0_0 = arith.constant 0 : index
    %0 = vector.load %arg1[%c0, %c0_0] : memref<1x2048xf32, #tpu.memory_space<vmem>>, vector<1x2048xf32>
    %c0_1 = arith.constant 0 : index
    %c0_2 = arith.constant 0 : index
    %1 = vector.load %arg2[%c0_1, %c0_2] : memref<1x2048xf32, #tpu.memory_space<vmem>>, vector<1x2048xf32>
    tpu.vector_store %arg2[%c0_1, %c0_2], %0 {strides = array<i32>} : memref<1x2048xf32, #tpu.memory_space<vmem>>, vector<1x2048xf32>,
    return
  }
  func.func @transform_0(%arg0: i32) -> (i32, i32) {
    %c0_i32 = arith.constant 0 : i32
    %c0_i32_0 = arith.constant 0 : i32
    %c0_i32_1 = arith.constant 0 : i32
    return %c0_i32, %c0_i32_0 : i32, i32
  }
  func.func @transform_1(%arg0: i32) -> (i32, i32) {
    %c0_i32 = arith.constant 0 : i32
    %c0_i32_0 = arith.constant 0 : i32
    %c0_i32_1 = arith.constant 0 : i32
    return %c0_i32, %c0_i32_0 : i32, i32
  }
}

</mosaic_0001>

<llo_original>
// kernel: _identity.1
$region0: #{_identity.1}
  #allocation0 [shape = 'u32[]', space=smem, size = 0x4, offset = 0x4, fixed_abs, tag = 'smem constant byte address 0x4 - core index']
  #allocation1 [shape = 'u32[144,128]{1,0:T(1,128)}', space=vmem, size = 0x12000, scoped, tag = 'internal scratch']
  %s0 = inlined_call_operand.vmem [shape: f32[1,2048], index: 0, kind: input, shape index: {}, may-alias: {0,1}]
  %s1 = inlined_call_operand.vmem [shape: f32[1,2048], index: 1, kind: output, shape index: {}, may-alias: {0,1}]
  %s2 = sld [smem:[#allocation0]]
  $region14: #{_identity.1} parent=0
    _
  %s4 = ssub.s32 1, %s2
  %s5 = scalar_select 0, %s4, %s2
  // Predicated region
  $region2: #{_identity.1} parent=0 // pred_check
    _
  $region3: #{_identity.1} parent=0 // pred_check_branch
    %7 = sbr.rel (0) target = $region5
  $region4: #{_identity.1} parent=0 // pred_region
    _
  $region5: #{_identity.1} parent=0 // pred_fallthru
    _
  %v8 = vld [vmem:[%s0] sm:$0xff]
  %v9 = vld [vmem:[%s0 + $0x8] sm:$0xff]
  %10 = vst [vmem:[%s1] sm:$0xff] %v8
  %11 = vst [vmem:[%s1 + $0x8] sm:$0xff] %v9
  // Predicated region
  $region6: #{_identity.1} parent=0 // pred_check
    _
  $region7: #{_identity.1} parent=0 // pred_check_branch
    %13 = sbr.rel (0) target = $region9
  $region8: #{_identity.1} parent=0 // pred_region
    _
  $region9: #{_identity.1} parent=0 // pred_fallthru
    _
  // Predicated region
  $region10: #{_identity.1} parent=0 // pred_check
    _
  $region11: #{_identity.1} parent=0 // pred_check_branch
    %15 = sbr.rel (0) target = $region13
  $region12: #{_identity.1} parent=0 // pred_region
    _
  $region13: #{_identity.1} parent=0 // pred_fallthru
    _

</llo_original>
